<compile_context>
chip_gen: v6e
topology: v6e:2x2x1
jax: 0.10.0
libtpu: 0.0.40
codegen_flags: <defaults>
</compile_context>

<pallas_src>
import functools

import jax
import jax.numpy as jnp
import numpy as np
from jax.experimental import pallas as pl
from jax.experimental.pallas import tpu as pltpu


_COMPILER_PARAMS = pltpu.CompilerParams(
    dimension_semantics=("parallel",),      # grid over plane-blocks is independent
    vmem_limit_bytes=32 * 1024 * 1024,      # safe on v5e/v6e (128 MiB) and v7x (64 MiB)
)


def _choose_block_planes(n_planes, plane_bytes):
    """How many (H, W) planes to process per grid step."""
    # Target >= ~512 KiB of input per step (HBM-roofline regime), cap the
    # double-buffered VMEM footprint (<~6 MiB total incl. lane padding), and
    # keep >= 2 grid steps when possible so both v7x TensorCores get work.
    tn = max(1, min(128, (512 * 1024) // max(plane_bytes, 1)))
    if n_planes >= 2:
        tn = min(tn, pl.cdiv(n_planes, 2))
    return max(1, min(tn, n_planes))


def _window_ds(offset, out_size, stride):
    # stride == 1 can only happen for a window of 1 along that axis (offset 0).
    return pl.ds(offset, out_size) if stride == 1 else pl.ds(offset, out_size, stride)


@functools.lru_cache(maxsize=None)
def _build_pool_window(n_planes, h, w, ph, pw, tn, dtype_name):
    """Preferred path: P strided window loads accumulated with jnp.maximum."""
    dtype = jnp.dtype(dtype_name)
    hp, wp = h // ph, w // pw

    def kernel(x_ref, o_ref):
        # x_ref: (tn, h, w)   o_ref: (tn, hp, wp)
        acc = None
        for oh in range(ph):
            for ow in range(pw):
                v = x_ref[:, _window_ds(oh, hp, ph), _window_ds(ow, wp, pw)]
                acc = v if acc is None else jnp.maximum(acc, v)
        o_ref[...] = acc

    call = pl.pallas_call(
        kernel,
        out_shape=jax.ShapeDtypeStruct((n_planes, hp, wp), dtype),
        grid=(pl.cdiv(n_planes, tn),),
        in_specs=[pl.BlockSpec((tn, h, w), lambda n: (n, 0, 0))],
        out_specs=pl.BlockSpec((tn, hp, wp), lambda n: (n, 0, 0)),
        compiler_params=_COMPILER_PARAMS,
    )
    return jax.jit(call)


@functools.lru_cache(maxsize=None)
def _build_pool_rowmax(n_planes, h, w, ph, pw, tn, dtype_name):
    """Fallback: row (ph) reduction in-kernel via contiguous lane slices;
    the column (pw) reduction runs in XLA on the (1/ph-sized) result."""
    dtype = jnp.dtype(dtype_name)
    hp, wp = h // ph, w // pw

    def kernel(x_ref, o_ref):
        # x_ref: (tn, hp, ph*w)   o_ref: (tn, hp, w)
        x = x_ref[...]
        acc = x[:, :, 0:w]
        for oh in range(1, ph):
            acc = jnp.maximum(acc, x[:, :, oh * w:(oh + 1) * w])
        o_ref[...] = acc

    row_call = pl.pallas_call(
        kernel,
        out_shape=jax.ShapeDtypeStruct((n_planes, hp, w), dtype),
        grid=(pl.cdiv(n_planes, tn),),
        in_specs=[pl.BlockSpec((tn, hp, ph * w), lambda n: (n, 0, 0))],
        out_specs=pl.BlockSpec((tn, hp, w), lambda n: (n, 0, 0)),
        compiler_params=_COMPILER_PARAMS,
    )

    def pool(x3):                                   # x3: (n_planes, h, w)
        rows = x3.reshape(n_planes, hp, ph * w)     # free reshape (contiguous split)
        row_pooled = row_call(rows) if ph > 1 else rows
        if pw > 1:
            row_pooled = row_pooled.reshape(n_planes, hp, wp, pw).max(axis=3)
        return row_pooled.reshape(n_planes, hp, wp)

    return jax.jit(pool)


_IMPL_CACHE = {}


def _select_pool_builder(h, w, ph, pw, dtype):
    """Pick the strided-window kernel when it lowers and is bit-exact on a tiny
    probe, otherwise the guaranteed fallback (decided once per config)."""
    key = (h, w, ph, pw, jnp.dtype(dtype).name)
    impl = _IMPL_CACHE.get(key)
    if impl is None:
        n_probe = 2
        probe = (jnp.arange(n_probe * h * w, dtype=jnp.float32) % 251.0
                 ).reshape(n_probe, h, w).astype(dtype)
        ref = probe.reshape(n_probe, h // ph, ph, w // pw, pw).max(axis=(2, 4))
        try:
            fast = _build_pool_window(n_probe, h, w, ph, pw, n_probe, key[-1])
            got = jax.block_until_ready(fast(probe))
            impl = "window" if bool(jnp.array_equal(got, ref)) else "rowmax"
        except Exception:   # strided ref loads not supported by this Mosaic build
            impl = "rowmax"
        _IMPL_CACHE[key] = impl
    return _build_pool_window if impl == "window" else _build_pool_rowmax


def maxpool2d_pallas(x, patch_size):
    """MaxPool2d(kernel_size=patch_size, stride=patch_size) on NCHW input."""
    B, C, H, W = x.shape
    ph, pw = patch_size
    if H % ph or W % pw:
        # TODO(synk): PyTorch MaxPool2d silently floors ragged borders; this
        # module always uses img_size divisible by 16, so reject instead.
        raise ValueError("H/W must be divisible by the patch size")
    if ph == 1 and pw == 1:
        return x                                    # 1x1 pooling is the identity
    Hp, Wp = H // ph, W // pw
    N = B * C
    x3 = x.reshape(N, H, W)                         # free reshape, native NCHW order
    tn = _choose_block_planes(N, H * W * x.dtype.itemsize)
    builder = _select_pool_builder(H, W, ph, pw, x.dtype)
    pooled = builder(N, H, W, ph, pw, tn, jnp.dtype(x.dtype).name)(x3)
    return pooled.reshape(B, C, Hp, Wp)


class PatchEmbed:
    """JAX/Pallas port of the PyTorch PatchEmbed (MaxPool2d projection).

    Note: `embed_dim` is accepted for interface parity but unused -- the
    reference module's projection is a parameter-free MaxPool2d.
    """

    def __init__(self, img_size=(32, 32), embed_dim=320, frame_size=8):
        self.img_size = list(img_size)
        self.patch_size = [img_size[0] // 16, img_size[1] // 16]
        self.num_patches = 16 * 16
        self.frame_size = frame_size
        self.embed_dim = embed_dim

    def __call__(self, x):
        # x: (B, C, H, W) NCHW with B = b * frame_size
        B, C, H, W = x.shape
        f = self.frame_size
        assert B % f == 0, "batch must be a multiple of frame_size"
        pooled = maxpool2d_pallas(x, self.patch_size)        # (B, C, Hp, Wp)
        Hp, Wp = pooled.shape[2], pooled.shape[3]
        b = B // f
        # rearrange '(b f) d x y -> b (f x y) d' -- touches only 1/P of the
        # input bytes; kept in XLA (fusing it into the kernel would shrink the
        # output lane width to C and regress store efficiency for small C).
        out = pooled.reshape(b, f, C, Hp, Wp)
        out = out.transpose(0, 1, 3, 4, 2)                   # (b, f, Hp, Wp, C)
        return out.reshape(b, f * Hp * Wp, C)


if __name__ == "__main__":
    key = jax.random.PRNGKey(0)
    frame_size = 2
    b, C = 2, 4
    H = W = 32                         # module default img_size -> 2x2 pooling
    B = b * frame_size                 # leading dim is (b * frames)
    x = jax.random.normal(key, (B, C, H, W), dtype=jnp.float32)

    model = PatchEmbed(img_size=(H, W), embed_dim=320, frame_size=frame_size)
    out = jax.block_until_ready(model(x))

    # Pure-JAX reference of the exact PyTorch forward semantics.
    ph, pw = model.patch_size
    Hp, Wp = H // ph, W // pw
    ref = x.reshape(B, C, Hp, ph, Wp, pw).max(axis=(3, 5))           # MaxPool2d
    ref = ref.reshape(b, frame_size, C, Hp, Wp).transpose(0, 1, 3, 4, 2)
    ref = ref.reshape(b, frame_size * Hp * Wp, C)                    # rearrange

    assert out.shape == (b, frame_size * model.num_patches, C), out.shape
    np.testing.assert_allclose(np.asarray(out), np.asarray(ref), rtol=0, atol=0)
    print("KERNEL_OK")
</pallas_src>

<mosaic_0001>
module attributes {stable_mosaic.version = 11 : i64} {
  func.func @kernel(%arg0: i32, %arg1: memref<2x32x32xf32, #tpu.memory_space<vmem>>, %arg2: memref<2x16x16xf32, #tpu.memory_space<vmem>>) attributes {dimension_semantics = [#tpu.dimension_semantics<parallel>], iteration_bounds = array<i64: 1>, scalar_prefetch = 0 : i64, scratch_operands = 0 : i64, tpu.core_type = #tpu.core_type<tc>, window_params = [{transform_indices = @transform_0, window_bounds = array<i64: 2, 32, 32>}, {transform_indices = @transform_1, window_bounds = array<i64: 2, 16, 16>}]} {
    %c0 = arith.constant 0 : index
    %c0_0 = arith.constant 0 : index
    %c0_1 = arith.constant 0 : index
    %0 = tpu.strided_load %arg1[%c0, %c0_0, %c0_1] {strides = array<i32: 1, 2, 2>} : memref<2x32x32xf32, #tpu.memory_space<vmem>>, vector<2x16x16xf32>
    %c0_2 = arith.constant 0 : index
    %c0_3 = arith.constant 0 : index
    %c1 = arith.constant 1 : index
    %1 = tpu.strided_load %arg1[%c0_2, %c0_3, %c1] {strides = array<i32: 1, 2, 2>} : memref<2x32x32xf32, #tpu.memory_space<vmem>>, vector<2x16x16xf32>
    %2 = arith.maximumf %0, %1 : vector<2x16x16xf32>
    %c0_4 = arith.constant 0 : index
    %c1_5 = arith.constant 1 : index
    %c0_6 = arith.constant 0 : index
    %3 = tpu.strided_load %arg1[%c0_4, %c1_5, %c0_6] {strides = array<i32: 1, 2, 2>} : memref<2x32x32xf32, #tpu.memory_space<vmem>>, vector<2x16x16xf32>
    %4 = arith.maximumf %2, %3 : vector<2x16x16xf32>
    %c0_7 = arith.constant 0 : index
    %c1_8 = arith.constant 1 : index
    %c1_9 = arith.constant 1 : index
    %5 = tpu.strided_load %arg1[%c0_7, %c1_8, %c1_9] {strides = array<i32: 1, 2, 2>} : memref<2x32x32xf32, #tpu.memory_space<vmem>>, vector<2x16x16xf32>
    %6 = arith.maximumf %4, %5 : vector<2x16x16xf32>
    %c0_10 = arith.constant 0 : index
    %c0_11 = arith.constant 0 : index
    %c0_12 = arith.constant 0 : index
    %7 = vector.load %arg2[%c0_10, %c0_11, %c0_12] : memref<2x16x16xf32, #tpu.memory_space<vmem>>, vector<2x16x16xf32>
    tpu.vector_store %arg2[%c0_10, %c0_11, %c0_12], %6 {strides = array<i32>} : memref<2x16x16xf32, #tpu.memory_space<vmem>>, vector<2x16x16xf32>,
    return
  }
  func.func @transform_0(%arg0: i32) -> (i32, i32, i32) {
    %c0_i32 = arith.constant 0 : i32
    %c0_i32_0 = arith.constant 0 : i32
    %c0_i32_1 = arith.constant 0 : i32
    return %arg0, %c0_i32, %c0_i32_0 : i32, i32, i32
  }
  func.func @transform_1(%arg0: i32) -> (i32, i32, i32) {
    %c0_i32 = arith.constant 0 : i32
    %c0_i32_0 = arith.constant 0 : i32
    %c0_i32_1 = arith.constant 0 : i32
    return %arg0, %c0_i32, %c0_i32_0 : i32, i32, i32
  }
}

module attributes {stable_mosaic.version = 11 : i64} {
  func.func @kernel(%arg0: i32, %arg1: memref<8x16x64xf32, #tpu.memory_space<vmem>>, %arg2: memref<8x16x32xf32, #tpu.memory_space<vmem>>) attributes {dimension_semantics = [#tpu.dimension_semantics<parallel>], iteration_bounds = array<i64: 2>, scalar_prefetch = 0 : i64, scratch_operands = 0 : i64, tpu.core_type = #tpu.core_type<tc>, window_params = [{transform_indices = @transform_0, window_bounds = array<i64: 8, 16, 64>}, {transform_indices = @transform_1, window_bounds = array<i64: 8, 16, 32>}]} {
    %c0 = arith.constant 0 : index
    %c0_0 = arith.constant 0 : index
    %c0_1 = arith.constant 0 : index
    %0 = vector.load %arg1[%c0, %c0_0, %c0_1] : memref<8x16x64xf32, #tpu.memory_space<vmem>>, vector<8x16x64xf32>
    %1 = vector.extract_strided_slice %0 {offsets = [0, 0, 0], sizes = [8, 16, 32], strides = [1, 1, 1]} : vector<8x16x64xf32> to vector<8x16x32xf32>
    %2 = vector.extract_strided_slice %0 {offsets = [0, 0, 32], sizes = [8, 16, 32], strides = [1, 1, 1]} : vector<8x16x64xf32> to vector<8x16x32xf32>
    %3 = arith.maximumf %1, %2 : vector<8x16x32xf32>
    %c0_2 = arith.constant 0 : index
    %c0_3 = arith.constant 0 : index
    %c0_4 = arith.constant 0 : index
    %4 = vector.load %arg2[%c0_2, %c0_3, %c0_4] : memref<8x16x32xf32, #tpu.memory_space<vmem>>, vector<8x16x32xf32>
    tpu.vector_store %arg2[%c0_2, %c0_3, %c0_4], %3 {strides = array<i32>} : memref<8x16x32xf32, #tpu.memory_space<vmem>>, vector<8x16x32xf32>,
    return
  }
  func.func @transform_0(%arg0: i32) -> (i32, i32, i32) {
    %c0_i32 = arith.constant 0 : i32
    %c0_i32_0 = arith.constant 0 : i32
    %c0_i32_1 = arith.constant 0 : i32
    return %arg0, %c0_i32, %c0_i32_0 : i32, i32, i32
  }
  func.func @transform_1(%arg0: i32) -> (i32, i32, i32) {
    %c0_i32 = arith.constant 0 : i32
    %c0_i32_0 = arith.constant 0 : i32
    %c0_i32_1 = arith.constant 0 : i32
    return %arg0, %c0_i32, %c0_i32_0 : i32, i32, i32
  }
}

</mosaic_0001>

<llo_original>
// kernel: pool.1
$region0: #{pool.1}
  #allocation0 [shape = 'u32[]', space=smem, size = 0x4, offset = 0x4, fixed_abs, tag = 'smem constant byte address 0x4 - core index']
  #allocation1 [shape = 'u32[144,128]{1,0:T(1,128)}', space=vmem, size = 0x12000, scoped, tag = 'internal scratch']
  %s0 = inlined_call_operand.vmem [shape: f32[16,16,64], index: 0, kind: input, shape index: {}]
  %s1 = inlined_call_operand.vmem [shape: f32[16,16,32], index: 1, kind: output, shape index: {}]
  %s2 = sld [smem:[#allocation0]]
  $region37: #{pool.1} parent=0
    _
  %s4 = ssub.s32 1, %s2
  %s5 = scalar_select 0, %s4, %s2
  loop: start=0, step=1, limit=4
  $region2: #{pool.1} parent=0 // loop_pre_header
    _
  $region3: #{pool.1} parent=0 // loop_header
    %s7 = sphi 0, %s11
    %p8 = scmp.ge.s32.totalorder %s7, 4
    %s17 = sphi 0, %s19
    %s20 = sphi 0, %s17
    %s21 = sphi 0, %s20
    %s37 = sphi 0, %s21
    %s43 = sphi 0, %s45
    %s46 = sphi 0, %s43
    %s47 = sphi 0, %s46
    %s63 = sphi 0, %s47
  $region4: #{pool.1} parent=0 // loop_header_branch
    %10 = sbr.rel (%p8) target = $region8
  $region5: #{pool.1} parent=0 // loop_body
    %s12 = ssub.s32 %s7, 1
    %s13 = ssub.s32 %s7, 2
    %s14 = sadd.s32 %s7, 1
    %s15 = ssub.s32 %s7, %s14
    %p16 = scmp.eq.s32.totalorder %s15, 0
    %s18 = sadd.s32 %s17, 1
    %s19 = scalar_select %p16, %s17, %s18
    %p22 = pneg %p16
    %p23 = scmp.eq.s32.totalorder %s7, 1
    %p24 = por %p22, %p23
    %p25 = scmp.ne.s32.totalorder %s17, %s20
    %p26 = scmp.eq.s32.totalorder %s7, 0
    %p27 = por %p25, %p26
    %p28 = scmp.ne.s32.totalorder %s17, %s20
    %p29 = scmp.eq.s32.totalorder %s12, 1
    %p30 = por %p28, %p29
    %p31 = scmp.ne.s32.totalorder %s20, %s21
    %p32 = scmp.eq.s32.totalorder %s12, 0
    %p33 = por %p31, %p32
    %p34 = scmp.ne.s32.totalorder %s20, %s21
    %p35 = scmp.eq.s32.totalorder %s13, 1
    %p36 = por %p34, %p35
    %p38 = scmp.ne.s32.totalorder %s21, %s37
    %p39 = scmp.eq.s32.totalorder %s13, 0
    %p40 = por %p38, %p39
    %s41 = ssub.s32 %s7, %s14
    %p42 = scmp.eq.s32.totalorder %s41, 0
    %s44 = sadd.s32 %s43, 1
    %s45 = scalar_select %p42, %s43, %s44
    %p48 = pneg %p42
    %p49 = scmp.eq.s32.totalorder %s7, 1
    %p50 = por %p48, %p49
    %p51 = scmp.ne.s32.totalorder %s43, %s46
    %p52 = scmp.eq.s32.totalorder %s7, 0
    %p53 = por %p51, %p52
    %p54 = scmp.ne.s32.totalorder %s43, %s46
    %p55 = scmp.eq.s32.totalorder %s12, 1
    %p56 = por %p54, %p55
    %p57 = scmp.ne.s32.totalorder %s46, %s47
    %p58 = scmp.eq.s32.totalorder %s12, 0
    %p59 = por %p57, %p58
    %p60 = scmp.ne.s32.totalorder %s46, %s47
    %p61 = scmp.eq.s32.totalorder %s13, 1
    %p62 = por %p60, %p61
    %p64 = scmp.ne.s32.totalorder %s47, %s63
    %p65 = scmp.eq.s32.totalorder %s13, 0
    %p66 = por %p64, %p65
    %p67 = scmp.le.s32.totalorder 1, %s7
    %p68 = scmp.lt.s32.totalorder %s7, 3
    %p69 = pnand %p67, %p68
    %p70 = pneg %p69
    // Predicated region
    $region9: #{pool.1} parent=5 // pred_check
      _
    $region10: #{pool.1} parent=5 // pred_check_branch
      %72 = sbr.rel (%p69) target = $region12
    $region11: #{pool.1} parent=5 // pred_region
      %s73 = ssub.s32 %s7, 1
    $region12: #{pool.1} parent=5 // pred_fallthru
      _
    %p74 = scmp.lt.s32.totalorder %s7, 2
    // Predicated region
    $region13: #{pool.1} parent=5 // pred_check
      %p75 = pneg %p74
    $region14: #{pool.1} parent=5 // pred_check_branch
      %77 = sbr.rel (%p75) target = $region16
    $region15: #{pool.1} parent=5 // pred_region
      // Predicated region
      $region17: #{pool.1} parent=15 // pred_check
        %p78 = pneg %p27
      $region18: #{pool.1} parent=15 // pred_check_branch
        %80 = sbr.rel (%p78) target = $region20
      $region19: #{pool.1} parent=15 // pred_region
        %s81 = smul.u32 8, %s7
        %p82 = scmp.lt.s32.totalorder %s81, 15
        %s83 = scalar_select %p82, %s81, 15
        %s84 = smul.addr %s83, 2
        %s85 = smul.addr %s84, 8
        %s86 = scalar_lea.vmem %s0, %s85
        %s87 = smul.u32 8, %s7
      $region20: #{pool.1} parent=15 // pred_fallthru
        _
    $region16: #{pool.1} parent=5 // pred_fallthru
      _
    %p88 = scmp.le.s32.totalorder 1, %s7
    %p89 = scmp.lt.s32.totalorder %s7, 3
    %p90 = pnand %p88, %p89
    %p91 = pneg %p90
    // Predicated region
    $region21: #{pool.1} parent=5 // pred_check
      _
    $region22: #{pool.1} parent=5 // pred_check_branch
      %93 = sbr.rel (%p90) target = $region24
    $region23: #{pool.1} parent=5 // pred_region
      %s94 = ssub.s32 %s7, 1
      %s95 = smul.u32 8, %s12
      %p96 = scmp.lt.s32.totalorder %s95, 15
      %s97 = scalar_select %p96, %s95, 15
      %s98 = smul.addr %s97, 2
      %s99 = smul.addr %s98, 8
      %s100 = scalar_lea.vmem %s0, %s99
      %p101 = pneg %p33
      %p102 = pneg %p30
      %p103 = pneg %p59
      %p104 = pneg %p56
      %s105 = smul.u32 8, %s12
      %p106 = scmp.lt.s32.totalorder %s105, 15
      %s107 = scalar_select %p106, %s105, 15
      %s108 = smul.addr %s107, 2
      %s109 = smul.addr %s108, 8
      %s110 = scalar_lea.vmem %s1, %s109
      %s111 = smul.u32 8, %s12
      %p112 = scmp.lt.s32.totalorder %s111, 15
      %s113 = scalar_select %p112, %s111, 15
      %s114 = smul.addr %s113, 2
      %s115 = smul.addr %s114, 8
      %s116 = scalar_lea.vmem %s0, %s115
      %s117 = smul.u32 8, %s12
      %s118 = smul.u32 8, %s12
      %p119 = scmp.lt.s32.totalorder %s118, 15
      %s120 = scalar_select %p119, %s118, 15
      %s121 = smul.addr %s120, 2
      %s122 = smul.addr %s121, 8
      %s123 = scalar_lea.vmem %s1, %s122
      %s124 = smul.u32 8, %s12
      %v125 = vld [vmem:[%s116] sm:$0xff]
      %v126 = vld [vmem:[%s116 + $0x8] sm:$0xff]
      %v127 = vld [vmem:[%s116 + $0x10] sm:$0xff]
      %v128 = vld [vmem:[%s116 + $0x18] sm:$0xff]
      %v129 = vld [vmem:[%s116 + $0x20] sm:$0xff]
      %v130 = vld [vmem:[%s116 + $0x28] sm:$0xff]
      %v131 = vld [vmem:[%s116 + $0x30] sm:$0xff]
      %v132 = vld [vmem:[%s116 + $0x38] sm:$0xff]
      %v133 = vld [vmem:[%s116 + $0x40] sm:$0xff]
      %v134 = vld [vmem:[%s116 + $0x48] sm:$0xff]
      %v135 = vld [vmem:[%s116 + $0x50] sm:$0xff]
      %v136 = vld [vmem:[%s116 + $0x58] sm:$0xff]
      %v137 = vld [vmem:[%s116 + $0x60] sm:$0xff]
      %v138 = vld [vmem:[%s116 + $0x68] sm:$0xff]
      %v139 = vld [vmem:[%s116 + $0x70] sm:$0xff]
      %v140 = vld [vmem:[%s116 + $0x78] sm:$0xff]
      %157 = vrot.lane.b32.xlu0 %v125, 96
      %v158 = vpop.permute.xlu0 %157
      %159 = vrot.lane.b32.xlu0 %v126, 96
      %v160 = vpop.permute.xlu0 %159
      %161 = vrot.lane.b32.xlu0 %v127, 96
      %v162 = vpop.permute.xlu0 %161
      %163 = vrot.lane.b32.xlu0 %v128, 96
      %v164 = vpop.permute.xlu0 %163
      %165 = vrot.lane.b32.xlu0 %v129, 96
      %v166 = vpop.permute.xlu0 %165
      %167 = vrot.lane.b32.xlu0 %v130, 96
      %v168 = vpop.permute.xlu0 %167
      %169 = vrot.lane.b32.xlu0 %v131, 96
      %v170 = vpop.permute.xlu0 %169
      %171 = vrot.lane.b32.xlu0 %v132, 96
      %v172 = vpop.permute.xlu0 %171
      %173 = vrot.lane.b32.xlu0 %v133, 96
      %v174 = vpop.permute.xlu0 %173
      %175 = vrot.lane.b32.xlu0 %v134, 96
      %v176 = vpop.permute.xlu0 %175
      %177 = vrot.lane.b32.xlu0 %v135, 96
      %v178 = vpop.permute.xlu0 %177
      %179 = vrot.lane.b32.xlu0 %v136, 96
      %v180 = vpop.permute.xlu0 %179
      %181 = vrot.lane.b32.xlu0 %v137, 96
      %v182 = vpop.permute.xlu0 %181
      %183 = vrot.lane.b32.xlu0 %v138, 96
      %v184 = vpop.permute.xlu0 %183
      %185 = vrot.lane.b32.xlu0 %v139, 96
      %v186 = vpop.permute.xlu0 %185
      %187 = vrot.lane.b32.xlu0 %v140, 96
      %v188 = vpop.permute.xlu0 %187
      %v205 = vmax.f32 %v125, %v158
      %v206 = vmax.f32 %v126, %v160
      %v207 = vmax.f32 %v127, %v162
      %v208 = vmax.f32 %v128, %v164
      %v209 = vmax.f32 %v129, %v166
      %v210 = vmax.f32 %v130, %v168
      %v211 = vmax.f32 %v131, %v170
      %v212 = vmax.f32 %v132, %v172
      %v213 = vmax.f32 %v133, %v174
      %v214 = vmax.f32 %v134, %v176
      %v215 = vmax.f32 %v135, %v178
      %v216 = vmax.f32 %v136, %v180
      %v217 = vmax.f32 %v137, %v182
      %v218 = vmax.f32 %v138, %v184
      %v219 = vmax.f32 %v139, %v186
      %v220 = vmax.f32 %v140, %v188
      %vm221 = vcmask 261120
      %222 = vst.msk [vmem:[%s123] sm:$0xff] %vm221, %v205
      %223 = vst.msk [vmem:[%s123 + $0x8] sm:$0xff] %vm221, %v206
      %224 = vst.msk [vmem:[%s123 + $0x10] sm:$0xff] %vm221, %v207
      %225 = vst.msk [vmem:[%s123 + $0x18] sm:$0xff] %vm221, %v208
      %226 = vst.msk [vmem:[%s123 + $0x20] sm:$0xff] %vm221, %v209
      %227 = vst.msk [vmem:[%s123 + $0x28] sm:$0xff] %vm221, %v210
      %228 = vst.msk [vmem:[%s123 + $0x30] sm:$0xff] %vm221, %v211
      %229 = vst.msk [vmem:[%s123 + $0x38] sm:$0xff] %vm221, %v212
      %230 = vst.msk [vmem:[%s123 + $0x40] sm:$0xff] %vm221, %v213
      %231 = vst.msk [vmem:[%s123 + $0x48] sm:$0xff] %vm221, %v214
      %232 = vst.msk [vmem:[%s123 + $0x50] sm:$0xff] %vm221, %v215
      %233 = vst.msk [vmem:[%s123 + $0x58] sm:$0xff] %vm221, %v216
      %234 = vst.msk [vmem:[%s123 + $0x60] sm:$0xff] %vm221, %v217
      %235 = vst.msk [vmem:[%s123 + $0x68] sm:$0xff] %vm221, %v218
      %236 = vst.msk [vmem:[%s123 + $0x70] sm:$0xff] %vm221, %v219
      %237 = vst.msk [vmem:[%s123 + $0x78] sm:$0xff] %vm221, %v220
      %s238 = smul.u32 8, %s12
      %p239 = scmp.lt.s32.totalorder %s238, 15
      %s240 = scalar_select %p239, %s238, 15
      %s241 = smul.addr %s240, 2
      %s242 = smul.addr %s241, 8
      %s243 = scalar_lea.vmem %s1, %s242
      // Predicated region
      $region25: #{pool.1} parent=23 // pred_check
        %p244 = pneg %p56
      $region26: #{pool.1} parent=23 // pred_check_branch
        %246 = sbr.rel (%p244) target = $region28
      $region27: #{pool.1} parent=23 // pred_region
        %s247 = smul.u32 8, %s12
      $region28: #{pool.1} parent=23 // pred_fallthru
        _
    $region24: #{pool.1} parent=5 // pred_fallthru
      _
    %p248 = scmp.le.s32.totalorder 2, %s7
    // Predicated region
    $region29: #{pool.1} parent=5 // pred_check
      %p249 = pneg %p248
    $region30: #{pool.1} parent=5 // pred_check_branch
      %251 = sbr.rel (%p249) target = $region32
    $region31: #{pool.1} parent=5 // pred_region
      %s252 = ssub.s32 %s7, 2
      // Predicated region
      $region33: #{pool.1} parent=31 // pred_check
        %p253 = pneg %p62
      $region34: #{pool.1} parent=31 // pred_check_branch
        %255 = sbr.rel (%p253) target = $region36
      $region35: #{pool.1} parent=31 // pred_region
        %s256 = smul.u32 8, %s13
        %p257 = scmp.lt.s32.totalorder %s256, 15
        %s258 = scalar_select %p257, %s256, 15
        %s259 = smul.addr %s258, 2
        %s260 = smul.addr %s259, 8
        %s261 = scalar_lea.vmem %s1, %s260
      $region36: #{pool.1} parent=31 // pred_fallthru
        _
    $region32: #{pool.1} parent=5 // pred_fallthru
      _
  $region6: #{pool.1} parent=0 // loop_footer
    %s11 = sadd.s32 1, %s7
  $region7: #{pool.1} parent=0 // loop_footer_branch
    %6 = sbr.rel target = $region3
  $region8: #{pool.1} parent=0 // loop_exit
    _

</llo_original>
